<compile_context>
chip_gen: v5e
topology: v5e:2x2
jax: 0.10.0
libtpu: 0.0.40
codegen_flags: <defaults>
</compile_context>

<pallas_src>
import jax
import jax.numpy as jnp
from jax import lax
from jax.experimental import pallas as pl
from jax.experimental.pallas import tpu as pltpu

EPS = 1e-5
# Layer dims of AdvancedNeuralNetwork: 4 -> 16 -> 32 -> 16 -> 3
DIMS = [(4, 16), (16, 32), (32, 16), (16, 3)]

# Packed-parameter slab layout (transposed weights, batch-on-lanes kernel):
#   layer l weights W_l^T (fout_l, fin_l) live at rows [ROW_OFF[l], ROW_OFF[l]+fout_l)
#   of a (SLAB_ROWS, SLAB_LANES) slab; biases use the same rows of a (SLAB_ROWS, 1) column.
ROW_OFF = (0, 16, 48, 64)     # 16+32+16+3 = 67 rows used
SLAB_ROWS = 72                # padded to a multiple of 8 sublanes
SLAB_LANES = 128              # one lane tile

LANES = 128
MAX_BLOCK_B = 2048


def _round_up(n, m):
    return (n + m - 1) // m * m


def _choose_block_b(B):
    """Lane-aligned batch tile: <=2048 rows, padding <= one lane tile, and
    two grid steps when cheaply possible (so v7x's 2 TensorCores both work)."""
    B_lane = _round_up(B, LANES)
    if B_lane > MAX_BLOCK_B:
        return MAX_BLOCK_B
    if B_lane >= 2 * LANES and (B_lane // LANES) % 2 == 0:
        return B_lane // 2
    return B_lane


def mlp_kernel(x_ref, w_ref, b_ref, out_ref):
    """Fused MLP in batch-on-lanes layout.

    x_ref:   (4, TB)        activations, batch in the 128-lane axis
    w_ref:   (72, 128)      packed transposed weights (BN pre-folded into fc1/fc2)
    b_ref:   (72, 1)        packed biases (BN pre-folded), broadcast over lanes
    out_ref: (3, TB)        lane-dense output tile

    Dropout(p=0.3) is identity in eval mode; BatchNorm1d (eval) is folded on
    the host, so the body is four MXU matmuls with VPU bias-add / relu.
    """
    h = x_ref[...]                                        # (4, TB) f32/bf16
    for layer, (fin, fout) in enumerate(DIMS):
        off = ROW_OFF[layer]
        wt = w_ref[off:off + fout, 0:fin]                 # (fout, fin)
        b = b_ref[off:off + fout, :]                      # (fout, 1) -> lane bcast
        h = jnp.dot(wt, h.astype(wt.dtype),
                    preferred_element_type=jnp.float32) + b
        if layer < len(DIMS) - 1:                         # relu on all but fc4
            h = jnp.maximum(h, 0.0)
    out_ref[...] = h.astype(out_ref.dtype)


def fold_and_pack_params(p, dot_dtype=jnp.float32):
    """Fold eval-mode BatchNorm into fc1/fc2, transpose, and pack everything.

    Returns (w_slab, b_slab): one (72, 128) weight slab in `dot_dtype`
    (bf16 is the fast path on v6e/v7x MXUs) and one (72, 1) f32 bias column.
    """
    s1 = p["g1"] * lax.rsqrt(p["rv1"] + EPS)              # (1, 16)
    s2 = p["g2"] * lax.rsqrt(p["rv2"] + EPS)              # (1, 32)

    w_folded = [p["w1"] * s1, p["w2"] * s2, p["w3"], p["w4"]]
    b_folded = [(p["b1"] - p["rm1"]) * s1 + p["beta1"],
                (p["b2"] - p["rm2"]) * s2 + p["beta2"],
                p["b3"], p["b4"]]

    w_slab = jnp.zeros((SLAB_ROWS, SLAB_LANES), dot_dtype)
    b_slab = jnp.zeros((SLAB_ROWS, 1), jnp.float32)
    for off, w, b in zip(ROW_OFF, w_folded, b_folded):
        wt = w.T                                          # (fout, fin)
        bt = b.T                                          # (fout, 1)
        r, c = wt.shape
        w_slab = w_slab.at[off:off + r, :c].set(wt.astype(dot_dtype))
        b_slab = b_slab.at[off:off + r, :].set(bt)
    return w_slab, b_slab


def advanced_nn_forward(x, w_slab, b_slab, *, block_b=None):
    """x: (B, 4) float32 -> (B, 3) float32 (eval-mode forward)."""
    B = x.shape[0]
    if block_b is None:
        block_b = _choose_block_b(B)
    B_pad = _round_up(B, block_b)

    # Batch-on-lanes layout: (4, B) input, lane-padded to a multiple of block_b.
    # Casting here (instead of inside the kernel) makes the DMA itself bf16
    # when dot_dtype=bfloat16 is selected.
    x_t = x.T.astype(w_slab.dtype)                        # (4, B)
    if B_pad != B:
        x_t = jnp.pad(x_t, ((0, 0), (0, B_pad - B)))

    const = lambda i: (0, 0)   # weights / bias resident in VMEM across grid steps

    out_t = pl.pallas_call(
        mlp_kernel,
        out_shape=jax.ShapeDtypeStruct((3, B_pad), jnp.float32),
        grid=(B_pad // block_b,),
        in_specs=[
            pl.BlockSpec((4, block_b), lambda i: (0, i)),   # x, tiled over lanes
            pl.BlockSpec(w_slab.shape, const),
            pl.BlockSpec(b_slab.shape, const),
        ],
        out_specs=pl.BlockSpec((3, block_b), lambda i: (0, i)),
        compiler_params=pltpu.CompilerParams(
            dimension_semantics=("parallel",)),             # megacore-friendly
    )(x_t, w_slab, b_slab)

    return out_t[:, :B].T                                   # (B, 3)


def init_params(key):
    """Deterministic synthetic parameters matching the PyTorch module's shapes."""
    keys = jax.random.split(key, 16)
    p = {}
    ki = 0
    for idx, (fin, fout) in enumerate(DIMS, start=1):
        bound = 1.0 / jnp.sqrt(jnp.float32(fin))
        p[f"w{idx}"] = jax.random.uniform(keys[ki], (fin, fout), jnp.float32, -bound, bound); ki += 1
        p[f"b{idx}"] = jax.random.uniform(keys[ki], (1, fout), jnp.float32, -bound, bound); ki += 1
    # BatchNorm1d params (gamma, beta, running mean/var) for layers 1 (16) and 2 (32)
    for idx, f in ((1, 16), (2, 32)):
        p[f"g{idx}"] = 1.0 + 0.1 * jax.random.normal(keys[ki], (1, f), jnp.float32); ki += 1
        p[f"beta{idx}"] = 0.1 * jax.random.normal(keys[ki], (1, f), jnp.float32); ki += 1
        p[f"rm{idx}"] = 0.05 * jax.random.normal(keys[ki], (1, f), jnp.float32); ki += 1
        p[f"rv{idx}"] = 1.0 + 0.1 * jax.random.uniform(keys[ki], (1, f), jnp.float32); ki += 1
    return p


def reference_forward(x, p):
    """Pure-JAX reference (unfolded BN, eval mode) for correctness checking."""
    h = x @ p["w1"] + p["b1"]
    h = (h - p["rm1"]) / jnp.sqrt(p["rv1"] + EPS) * p["g1"] + p["beta1"]
    h = jnp.maximum(h, 0.0)
    h = h @ p["w2"] + p["b2"]
    h = (h - p["rm2"]) / jnp.sqrt(p["rv2"] + EPS) * p["g2"] + p["beta2"]
    h = jnp.maximum(h, 0.0)
    h = jnp.maximum(h @ p["w3"] + p["b3"], 0.0)
    return h @ p["w4"] + p["b4"]


if __name__ == "__main__":
    key = jax.random.PRNGKey(0)
    k_x, k_p = jax.random.split(key)

    B = 8
    x = jax.random.normal(k_x, (B, 4), jnp.float32)
    params = init_params(k_p)

    # Host-side BN folding + weight/bias packing (eval-mode semantics).
    # On v6e/v7x, dot_dtype=jnp.bfloat16 halves weight/activation DMA bytes with
    # f32 accumulation; kept f32 here so the demo matches the f32 reference to 1e-4
    # (with bf16 operands, loosen the tolerance to ~1e-2 relative).
    w_slab, b_slab = fold_and_pack_params(params, dot_dtype=jnp.float32)

    out = advanced_nn_forward(x, w_slab, b_slab)
    out = jax.block_until_ready(out)

    ref = reference_forward(x, params)
    assert out.shape == (B, 3), out.shape
    assert jnp.allclose(out, ref, atol=1e-4, rtol=1e-4), "mismatch vs reference"

    print("KERNEL_OK")
</pallas_src>

<mosaic_0001>
module attributes {stable_mosaic.version = 11 : i64} {
  func.func @mlp_kernel(%arg0: i32, %arg1: memref<4x128xf32, #tpu.memory_space<vmem>>, %arg2: memref<72x128xf32, #tpu.memory_space<vmem>>, %arg3: memref<72x1xf32, #tpu.memory_space<vmem>>, %arg4: memref<3x128xf32, #tpu.memory_space<vmem>>) attributes {dimension_semantics = [#tpu.dimension_semantics<parallel>], iteration_bounds = array<i64: 1>, scalar_prefetch = 0 : i64, scratch_operands = 0 : i64, tpu.core_type = #tpu.core_type<tc>, window_params = [{transform_indices = @transform_0, window_bounds = array<i64: 4, 128>}, {pipeline_mode = #tpu.pipeline_mode<synchronous>, transform_indices = @transform_1, window_bounds = array<i64: 72, 128>}, {pipeline_mode = #tpu.pipeline_mode<synchronous>, transform_indices = @transform_2, window_bounds = array<i64: 72, 1>}, {transform_indices = @transform_3, window_bounds = array<i64: 3, 128>}]} {
    %c0 = arith.constant 0 : index
    %c0_0 = arith.constant 0 : index
    %0 = vector.load %arg1[%c0, %c0_0] : memref<4x128xf32, #tpu.memory_space<vmem>>, vector<4x128xf32>
    %c0_1 = arith.constant 0 : index
    %c0_2 = arith.constant 0 : index
    %1 = vector.load %arg2[%c0_1, %c0_2] : memref<72x128xf32, #tpu.memory_space<vmem>>, vector<16x4xf32>
    %c0_3 = arith.constant 0 : index
    %c0_4 = arith.constant 0 : index
    %2 = vector.load %arg3[%c0_3, %c0_4] : memref<72x1xf32, #tpu.memory_space<vmem>>, vector<16x1xf32>
    %cst = arith.constant dense<0.000000e+00> : vector<16x128xf32>
    %3 = tpu.matmul %1, %0, %cst {dimension_numbers = #tpu.dot_dimension_numbers<[1], [0], [0], [1], [0, 0, 1, 1], [], []>} : vector<16x4xf32>, vector<4x128xf32>, vector<16x128xf32> -> vector<16x128xf32>
    %4 = vector.broadcast %2 : vector<16x1xf32> to vector<16x128xf32>
    %5 = arith.addf %3, %4 : vector<16x128xf32>
    %cst_5 = arith.constant 0.000000e+00 : f32
    %6 = vector.broadcast %cst_5 : f32 to vector<16x128xf32>
    %7 = arith.maximumf %5, %6 : vector<16x128xf32>
    %c16 = arith.constant 16 : index
    %c0_6 = arith.constant 0 : index
    %8 = vector.load %arg2[%c16, %c0_6] : memref<72x128xf32, #tpu.memory_space<vmem>>, vector<32x16xf32>
    %c16_7 = arith.constant 16 : index
    %c0_8 = arith.constant 0 : index
    %9 = vector.load %arg3[%c16_7, %c0_8] : memref<72x1xf32, #tpu.memory_space<vmem>>, vector<32x1xf32>
    %cst_9 = arith.constant dense<0.000000e+00> : vector<32x128xf32>
    %10 = tpu.matmul %8, %7, %cst_9 {dimension_numbers = #tpu.dot_dimension_numbers<[1], [0], [0], [1], [0, 0, 1, 1], [], []>} : vector<32x16xf32>, vector<16x128xf32>, vector<32x128xf32> -> vector<32x128xf32>
    %11 = vector.broadcast %9 : vector<32x1xf32> to vector<32x128xf32>
    %12 = arith.addf %10, %11 : vector<32x128xf32>
    %cst_10 = arith.constant 0.000000e+00 : f32
    %13 = vector.broadcast %cst_10 : f32 to vector<32x128xf32>
    %14 = arith.maximumf %12, %13 : vector<32x128xf32>
    %c48 = arith.constant 48 : index
    %c0_11 = arith.constant 0 : index
    %15 = vector.load %arg2[%c48, %c0_11] : memref<72x128xf32, #tpu.memory_space<vmem>>, vector<16x32xf32>
    %c48_12 = arith.constant 48 : index
    %c0_13 = arith.constant 0 : index
    %16 = vector.load %arg3[%c48_12, %c0_13] : memref<72x1xf32, #tpu.memory_space<vmem>>, vector<16x1xf32>
    %cst_14 = arith.constant dense<0.000000e+00> : vector<16x128xf32>
    %17 = tpu.matmul %15, %14, %cst_14 {dimension_numbers = #tpu.dot_dimension_numbers<[1], [0], [0], [1], [0, 0, 1, 1], [], []>} : vector<16x32xf32>, vector<32x128xf32>, vector<16x128xf32> -> vector<16x128xf32>
    %18 = vector.broadcast %16 : vector<16x1xf32> to vector<16x128xf32>
    %19 = arith.addf %17, %18 : vector<16x128xf32>
    %cst_15 = arith.constant 0.000000e+00 : f32
    %20 = vector.broadcast %cst_15 : f32 to vector<16x128xf32>
    %21 = arith.maximumf %19, %20 : vector<16x128xf32>
    %c64 = arith.constant 64 : index
    %c0_16 = arith.constant 0 : index
    %22 = vector.load %arg2[%c64, %c0_16] : memref<72x128xf32, #tpu.memory_space<vmem>>, vector<3x16xf32>
    %c64_17 = arith.constant 64 : index
    %c0_18 = arith.constant 0 : index
    %23 = vector.load %arg3[%c64_17, %c0_18] : memref<72x1xf32, #tpu.memory_space<vmem>>, vector<3x1xf32>
    %cst_19 = arith.constant dense<0.000000e+00> : vector<3x128xf32>
    %24 = tpu.matmul %22, %21, %cst_19 {dimension_numbers = #tpu.dot_dimension_numbers<[1], [0], [0], [1], [0, 0, 1, 1], [], []>} : vector<3x16xf32>, vector<16x128xf32>, vector<3x128xf32> -> vector<3x128xf32>
    %25 = vector.broadcast %23 : vector<3x1xf32> to vector<3x128xf32>
    %26 = arith.addf %24, %25 : vector<3x128xf32>
    %c0_20 = arith.constant 0 : index
    %c0_21 = arith.constant 0 : index
    %27 = vector.load %arg4[%c0_20, %c0_21] : memref<3x128xf32, #tpu.memory_space<vmem>>, vector<3x128xf32>
    tpu.vector_store %arg4[%c0_20, %c0_21], %26 {strides = array<i32>} : memref<3x128xf32, #tpu.memory_space<vmem>>, vector<3x128xf32>,
    return
  }
  func.func @transform_0(%arg0: i32) -> (i32, i32) {
    %c0_i32 = arith.constant 0 : i32
    %c0_i32_0 = arith.constant 0 : i32
    return %c0_i32, %arg0 : i32, i32
  }
  func.func @transform_1(%arg0: i32) -> (i32, i32) {
    %c0_i32 = arith.constant 0 : i32
    %c0_i32_0 = arith.constant 0 : i32
    %c0_i32_1 = arith.constant 0 : i32
    return %c0_i32, %c0_i32_0 : i32, i32
  }
  func.func @transform_2(%arg0: i32) -> (i32, i32) {
    %c0_i32 = arith.constant 0 : i32
    %c0_i32_0 = arith.constant 0 : i32
    %c0_i32_1 = arith.constant 0 : i32
    return %c0_i32, %c0_i32_0 : i32, i32
  }
  func.func @transform_3(%arg0: i32) -> (i32, i32) {
    %c0_i32 = arith.constant 0 : i32
    %c0_i32_0 = arith.constant 0 : i32
    return %c0_i32, %arg0 : i32, i32
  }
}

</mosaic_0001>

<llo_original>
// kernel: tpu_custom_call.1
$region0: #{tpu_custom_call.1}
  #allocation0 [shape = 'u32[]', space=smem, size = 0x4, offset = 0x4, fixed_abs, tag = 'smem constant byte address 0x4 - core index']
  #allocation1 [shape = 'u32[72,128]{1,0:T(1,128)}', space=vmem, size = 0x9000, scoped, tag = 'internal scratch']
  %s0 = inlined_call_operand.hbm [shape: f32[4,128], index: 0, kind: input, shape index: {}]
  %s1 = inlined_call_operand.vmem [shape: f32[72,128], index: 1, kind: input, shape index: {}]
  %s2 = inlined_call_operand.vmem [shape: f32[72,1], index: 2, kind: input, shape index: {}]
  %s3 = inlined_call_operand.hbm [shape: f32[3,128], index: 3, kind: output, shape index: {}]
  %s4 = sld [smem:[#allocation0]]
  $region26: #{tpu_custom_call.1} parent=0
    _
  %s6 = ssub.s32 1, %s4
  %s7 = scalar_select 0, %s6, %s4
  $region1: #{tpu_custom_call.1} parent=0
    #allocation2 [shape = 'u8[2048]{0}', space=vmem, size = 0x800, scoped, tag = 'input window, operand 0, single buffered']
    #allocation3 [shape = 's32[1]{0}', space=sflag, size = 0x4, scoped, tag = 'scoped memory for tpu_custom_call.1']
    #allocation4 [shape = 's32[1]{0}', space=sflag, size = 0x4, scoped, tag = 'scoped memory for tpu_custom_call.1']
    #allocation5 [shape = 'u8[2048]{0}', space=vmem, size = 0x800, scoped, tag = 'output window, operand 0, single buffered']
    %8 = vsyncpa [#allocation3], 0
    %9 = vsyncpa [#allocation4], 0
    // Predicated region
    $region2: #{tpu_custom_call.1} parent=1 // pred_check
      _
    $region3: #{tpu_custom_call.1} parent=1 // pred_check_branch
      %11 = sbr.rel (0) target = $region5
    $region4: #{tpu_custom_call.1} parent=1 // pred_region
      %13 = vsyncadd [#allocation3], 0
      %s15 = sshll.u32 %s0, 4
      %s16 = int_to_ptr.hbm [resolvable:$true] %s15
      %s17 = sshll.u32 [#allocation2], 4
      %s18 = int_to_ptr.vmem [resolvable:$true] %s17
      %20 = dma.hbm_to_vmem [thread:$0]  %s16, 64, %s18, [#allocation3]
    $region5: #{tpu_custom_call.1} parent=1 // pred_fallthru
      _
    // Predicated region
    $region6: #{tpu_custom_call.1} parent=1 // pred_check
      _
    $region7: #{tpu_custom_call.1} parent=1 // pred_check_branch
      %22 = sbr.rel (0) target = $region9
    $region8: #{tpu_custom_call.1} parent=1 // pred_region
      _
    $region9: #{tpu_custom_call.1} parent=1 // pred_fallthru
      _
    // Predicated region
    $region10: #{tpu_custom_call.1} parent=1 // pred_check
      _
    $region11: #{tpu_custom_call.1} parent=1 // pred_check_branch
      %24 = sbr.rel (0) target = $region13
    $region12: #{tpu_custom_call.1} parent=1 // pred_region
      _
    $region13: #{tpu_custom_call.1} parent=1 // pred_fallthru
      _
    // Predicated region
    $region14: #{tpu_custom_call.1} parent=1 // pred_check
      _
    $region15: #{tpu_custom_call.1} parent=1 // pred_check_branch
      %26 = sbr.rel (0) target = $region17
    $region16: #{tpu_custom_call.1} parent=1 // pred_region
      %28 = dma.done [#allocation3], 64
    $region17: #{tpu_custom_call.1} parent=1 // pred_fallthru
      _
    %v29 = vld [vmem:[#allocation2] sm:$0xf]
    %v30 = vld [vmem:[%s1] sm:$0xff]
    %v31 = vld [vmem:[%s1 + $0x8] sm:$0xff]
    %v32 = vld [vmem:[%s2] sm:$0xff]
    %v33 = vld [vmem:[%s2 + $0x8] sm:$0xff]
    %35 = vset.pattern.permute.xlu0 0
    %36 = vperm.xlu0 %35, %v32
    %v37 = vpop.permute.xlu0 %36
    %40 = vset.pattern.permute.xlu0 0
    %41 = vperm.xlu0 %40, %v33
    %v42 = vpop.permute.xlu0 %41
    %vm44 = vcmask 31744
    %v46 = vsel %vm44, %v30, 0
    %v49 = vsel %vm44, %v31, 0
    %vm51 = vcmask 1043456
    %v53 = vsel %vm51, %v29, 0
    %55 = vmatpush.msra.mxu0 0.0
    %56 = vmatpush.msra.mxu0 0.0
    %57 = vmatpush.msra.mxu0 0.0
    %58 = vmatpush.msra.mxu0 0.0
    %59 = vmatpush.msra.mxu0 0.0
    %60 = vmatpush.msra.mxu0 0.0
    %61 = vmatpush.msra.mxu0 0.0
    %62 = vmatpush.msra.mxu0 0.0
    %63 = vmatpush.msra.mxu0 0.0
    %64 = vmatpush.msra.mxu0 0.0
    %65 = vmatpush.msra.mxu0 0.0
    %66 = vmatpush.msra.mxu0 0.0
    %67 = vmatpush.msra.mxu0 0.0
    %68 = vmatpush.msra.mxu0 0.0
    %69 = vmatpush.msra.mxu0 0.0
    %70 = vmatpush.msra.mxu0 %v53
    %71 = vmatmul.f32.gmra.mxu0 %v46
    %v72 = vpop.f32.mrf.mxu0
    %v73 = vadd.f32 %v37, %v72
    %74 = vmatmul.f32.gmra.mxu0 %v49
    %v75 = vpop.f32.mrf.mxu0
    %v76 = vadd.f32 %v42, %v75
    %77 = vdwg.mxu0
    %v78 = vmax.f32 %v73, 0.0
    %v79 = vmax.f32 %v76, 0.0
    %v80 = vld [vmem:[%s1 + $0x10] sm:$0xff]
    %v81 = vld [vmem:[%s1 + $0x18] sm:$0xff]
    %v82 = vld [vmem:[%s1 + $0x20] sm:$0xff]
    %v83 = vld [vmem:[%s1 + $0x28] sm:$0xff]
    %v84 = vld [vmem:[%s2 + $0x10] sm:$0xff]
    %v85 = vld [vmem:[%s2 + $0x18] sm:$0xff]
    %v86 = vld [vmem:[%s2 + $0x20] sm:$0xff]
    %v87 = vld [vmem:[%s2 + $0x28] sm:$0xff]
    %89 = vset.pattern.permute.xlu0 0
    %90 = vperm.xlu0 %89, %v84
    %v91 = vpop.permute.xlu0 %90
    %94 = vset.pattern.permute.xlu0 0
    %95 = vperm.xlu0 %94, %v85
    %v96 = vpop.permute.xlu0 %95
    %99 = vset.pattern.permute.xlu0 0
    %100 = vperm.xlu0 %99, %v86
    %v101 = vpop.permute.xlu0 %100
    %104 = vset.pattern.permute.xlu0 0
    %105 = vperm.xlu0 %104, %v87
    %v106 = vpop.permute.xlu0 %105
    %vm108 = vcmask 130048
    %v110 = vsel %vm108, %v80, 0
    %v113 = vsel %vm108, %v81, 0
    %v116 = vsel %vm108, %v82, 0
    %v119 = vsel %vm108, %v83, 0
    %121 = vmatpush.msra.mxu0 0.0
    %122 = vmatpush.msra.mxu0 0.0
    %123 = vmatpush.msra.mxu0 0.0
    %124 = vmatpush.msra.mxu0 0.0
    %125 = vmatpush.msra.mxu0 0.0
    %126 = vmatpush.msra.mxu0 0.0
    %127 = vmatpush.msra.mxu0 0.0
    %128 = vmatpush.msra.mxu0 0.0
    %129 = vmatpush.msra.mxu0 0.0
    %130 = vmatpush.msra.mxu0 0.0
    %131 = vmatpush.msra.mxu0 0.0
    %132 = vmatpush.msra.mxu0 0.0
    %133 = vmatpush.msra.mxu0 0.0
    %134 = vmatpush.msra.mxu0 0.0
    %135 = vmatpush.msra.mxu0 %v79
    %136 = vmatpush.msra.mxu0 %v78
    %137 = vmatmul.f32.gmra.mxu0 %v110
    %v138 = vpop.f32.mrf.mxu0
    %v139 = vadd.f32 %v91, %v138
    %140 = vmatmul.f32.gmra.mxu0 %v113
    %v141 = vpop.f32.mrf.mxu0
    %v142 = vadd.f32 %v96, %v141
    %143 = vmatmul.f32.gmra.mxu0 %v116
    %v144 = vpop.f32.mrf.mxu0
    %v145 = vadd.f32 %v101, %v144
    %146 = vmatmul.f32.gmra.mxu0 %v119
    %v147 = vpop.f32.mrf.mxu0
    %v148 = vadd.f32 %v106, %v147
    %149 = vdwg.mxu0
    %v150 = vmax.f32 %v139, 0.0
    %v151 = vmax.f32 %v142, 0.0
    %v152 = vmax.f32 %v145, 0.0
    %v153 = vmax.f32 %v148, 0.0
    %v154 = vld [vmem:[%s1 + $0x30] sm:$0xff]
    %v155 = vld [vmem:[%s1 + $0x38] sm:$0xff]
    %v156 = vld [vmem:[%s2 + $0x30] sm:$0xff]
    %v157 = vld [vmem:[%s2 + $0x38] sm:$0xff]
    %159 = vset.pattern.permute.xlu0 0
    %160 = vperm.xlu0 %159, %v156
    %v161 = vpop.permute.xlu0 %160
    %164 = vset.pattern.permute.xlu0 0
    %165 = vperm.xlu0 %164, %v157
    %v166 = vpop.permute.xlu0 %165
    %vm168 = vcmask 261120
    %v170 = vsel %vm168, %v154, 0
    %v173 = vsel %vm168, %v155, 0
    %175 = vmatpush.msra.mxu0 0.0
    %176 = vmatpush.msra.mxu0 0.0
    %177 = vmatpush.msra.mxu0 0.0
    %178 = vmatpush.msra.mxu0 0.0
    %179 = vmatpush.msra.mxu0 0.0
    %180 = vmatpush.msra.mxu0 0.0
    %181 = vmatpush.msra.mxu0 0.0
    %182 = vmatpush.msra.mxu0 0.0
    %183 = vmatpush.msra.mxu0 0.0
    %184 = vmatpush.msra.mxu0 0.0
    %185 = vmatpush.msra.mxu0 0.0
    %186 = vmatpush.msra.mxu0 0.0
    %187 = vmatpush.msra.mxu0 %v153
    %188 = vmatpush.msra.mxu0 %v152
    %189 = vmatpush.msra.mxu0 %v151
    %190 = vmatpush.msra.mxu0 %v150
    %191 = vmatmul.f32.gmra.mxu0 %v170
    %v192 = vpop.f32.mrf.mxu0
    %v193 = vadd.f32 %v161, %v192
    %194 = vmatmul.f32.gmra.mxu0 %v173
    %v195 = vpop.f32.mrf.mxu0
    %v196 = vadd.f32 %v166, %v195
    %197 = vdwg.mxu0
    %v198 = vmax.f32 %v193, 0.0
    %v199 = vmax.f32 %v196, 0.0
    %v200 = vld [vmem:[%s1 + $0x40] sm:$0x7]
    %v201 = vld [vmem:[%s2 + $0x40] sm:$0x7]
    %203 = vset.pattern.permute.xlu0 0
    %204 = vperm.xlu0 %203, %v201
    %v205 = vpop.permute.xlu0 %204
    %v208 = vsel %vm108, %v200, 0
    %210 = vmatpush.msra.mxu0 0.0
    %211 = vmatpush.msra.mxu0 0.0
    %212 = vmatpush.msra.mxu0 0.0
    %213 = vmatpush.msra.mxu0 0.0
    %214 = vmatpush.msra.mxu0 0.0
    %215 = vmatpush.msra.mxu0 0.0
    %216 = vmatpush.msra.mxu0 0.0
    %217 = vmatpush.msra.mxu0 0.0
    %218 = vmatpush.msra.mxu0 0.0
    %219 = vmatpush.msra.mxu0 0.0
    %220 = vmatpush.msra.mxu0 0.0
    %221 = vmatpush.msra.mxu0 0.0
    %222 = vmatpush.msra.mxu0 0.0
    %223 = vmatpush.msra.mxu0 0.0
    %224 = vmatpush.msra.mxu0 %v199
    %225 = vmatpush.msra.mxu0 %v198
    %226 = vmatmul.f32.gmra.mxu0 %v208
    %v227 = vpop.f32.mrf.mxu0
    %v228 = vadd.f32 %v205, %v227
    %229 = vdwg.mxu0
    %230 = vst [vmem:[#allocation5] sm:$0x7] %v228
    // Predicated region
    $region18: #{tpu_custom_call.1} parent=1 // pred_check
      _
    $region19: #{tpu_custom_call.1} parent=1 // pred_check_branch
      %232 = sbr.rel (0) target = $region21
    $region20: #{tpu_custom_call.1} parent=1 // pred_region
      %234 = vsyncadd [#allocation4], 0
      %s236 = sshll.u32 [#allocation5], 4
      %s237 = int_to_ptr.vmem [resolvable:$true] %s236
      %s238 = sshll.u32 %s3, 4
      %s239 = int_to_ptr.hbm [resolvable:$true] %s238
      %241 = dma.vmem_to_hbm [thread:$0]  %s237, 64, %s239, [#allocation4]
    $region21: #{tpu_custom_call.1} parent=1 // pred_fallthru
      _
    // Predicated region
    $region22: #{tpu_custom_call.1} parent=1 // pred_check
      _
    $region23: #{tpu_custom_call.1} parent=1 // pred_check_branch
      %243 = sbr.rel (0) target = $region25
    $region24: #{tpu_custom_call.1} parent=1 // pred_region
      %245 = dma.done [#allocation4], 64
    $region25: #{tpu_custom_call.1} parent=1 // pred_fallthru
      _
    %246 = vsyncpa [#allocation3], 1
    %247 = vsyncpa [#allocation4], 1

</llo_original>
